<compile_context>
chip_gen: v5e
topology: v5e:2x2
jax: 0.10.0
libtpu: 0.0.40
codegen_flags: <defaults>
</compile_context>

<pallas_src>
import numpy as np
import jax
import jax.numpy as jnp
from jax.experimental import pallas as pl
from jax.experimental.pallas import tpu as pltpu


_FUSED_TARGET_BYTES = 2 * 1024 * 1024    # target x-block bytes per grid step (fused path)
_TWO_PASS_LANE_TILE = 32768              # lanes per tile in the large-image two-pass path


def _round_up(a, b):
    return (a + b - 1) // b * b


def _pack_params(params):
    """Pack the center-tap 1->8->1 MLP into a single (4, 8) f32 array (one VMEM tile)."""
    w1c = params["w1"][:, 0, 1, 1].astype(jnp.float32)                       # (8,)
    b1 = params["b1"].reshape(8).astype(jnp.float32)                         # (8,)
    w2c = params["w2"][0, :, 1, 1].astype(jnp.float32)                       # (8,)
    b2 = jnp.broadcast_to(params["b2"].reshape(1).astype(jnp.float32), (8,)) # (8,)
    return jnp.stack([w1c, b1, w2c, b2], axis=0)                             # (4, 8)


def _mlp_scale(mean, p_ref):
    """sigmoid(w2 . relu(w1 * mean + b1) + b2) per row.  Pure VPU/XLU/EUP work."""
    w1 = p_ref[0:1, :]                                        # (1, 8)
    b1 = p_ref[1:2, :]                                        # (1, 8)
    w2 = p_ref[2:3, :]                                        # (1, 8)
    b2 = p_ref[3:4, 0:1]                                      # (1, 1)
    h = jnp.maximum(mean * w1 + b1, 0.0)                      # (Bt, 8)
    z = jnp.sum(h * w2, axis=-1, keepdims=True) + b2          # (Bt, 1)
    return jax.nn.sigmoid(z)                                  # (Bt, 1), EUP


# ---------------- fused single-pass kernel (small / medium images) ----------------
def _make_fused_kernel(hw):
    inv_hw = 1.0 / float(hw)

    def kernel(x_ref, p_ref, o_ref):
        xf = x_ref[...].astype(jnp.float32)                   # (Bt, HW)
        mean = jnp.sum(xf, axis=-1, keepdims=True) * inv_hw   # (Bt, 1)  AdaptiveAvgPool2d(1)
        scale = _mlp_scale(mean, p_ref)                       # (Bt, 1)
        o_ref[...] = (xf * scale).astype(o_ref.dtype)         # lane-dense store

    return kernel


# ---------------- two-pass tiled path (large images; VMEM-safe on v7x) ----------------
def _make_reduce_kernel(hw, lane_tile):
    inv_hw = 1.0 / float(hw)

    def kernel(x_ref, p_ref, s_ref, acc_ref):
        t = pl.program_id(1)

        @pl.when(t == 0)
        def _():
            acc_ref[...] = jnp.zeros_like(acc_ref)

        xf = x_ref[...].astype(jnp.float32)                   # (Bt, L)
        lane = jax.lax.broadcasted_iota(jnp.int32, xf.shape, 1) + t * lane_tile
        xf = jnp.where(lane < hw, xf, 0.0)                    # mask the HW tail tile
        acc_ref[...] += jnp.sum(xf, axis=-1, keepdims=True)   # (Bt, 1)

        @pl.when(t == pl.num_programs(1) - 1)
        def _():
            s_ref[...] = _mlp_scale(acc_ref[...] * inv_hw, p_ref)

    return kernel


def _scale_kernel(x_ref, s_ref, o_ref):
    o_ref[...] = (x_ref[...].astype(jnp.float32) * s_ref[...]).astype(o_ref.dtype)


# ---------------- wrapper ----------------
def ca_layer_forward(x, params, *, fused_max_block_bytes=_FUSED_TARGET_BYTES):
    """x: (N, 1, H, W).  Returns CALayer(x) with the same shape/dtype."""
    N, C, H, W = x.shape
    assert C == 1, "CALayer's conv1 has in_channels=1, so `map` must be single-channel"
    hw = H * W
    itemsize = x.dtype.itemsize
    row_bytes = hw * itemsize

    x2 = x.reshape(N, hw)          # free reshape: batch on sublanes, pixels on lanes
    packed = _pack_params(params)  # (4, 8) f32

    if 8 * row_bytes <= fused_max_block_bytes:
        # ---- fused single pass: several images per grid step, one HBM read + one write ----
        bt = min(max(8, (fused_max_block_bytes // row_bytes) // 8 * 8), _round_up(N, 8))
        grid = (pl.cdiv(N, bt),)
        out2 = pl.pallas_call(
            _make_fused_kernel(hw),
            out_shape=jax.ShapeDtypeStruct((N, hw), x.dtype),
            grid_spec=pltpu.PrefetchScalarGridSpec(
                num_scalar_prefetch=0,
                grid=grid,
                in_specs=[
                    pl.BlockSpec((bt, hw), lambda b: (b, 0)),   # image rows (sublane-dense)
                    pl.BlockSpec((4, 8), lambda b: (0, 0)),     # packed MLP params (1 tile)
                ],
                out_specs=pl.BlockSpec((bt, hw), lambda b: (b, 0)),
            ),
            compiler_params=pltpu.CompilerParams(dimension_semantics=("parallel",)),
            cost_estimate=pl.CostEstimate(flops=3 * N * hw, transcendentals=N,
                                          bytes_accessed=2 * N * hw * itemsize),
        )(x2, packed)
    else:
        # ---- two-pass tiled path: (1) reduce HW tiles -> per-image scale, (2) apply scale ----
        bt = 8
        lane_tile = min(_TWO_PASS_LANE_TILE, _round_up(hw, 128))
        nb = pl.cdiv(N, bt)
        nt = pl.cdiv(hw, lane_tile)

        scale = pl.pallas_call(
            _make_reduce_kernel(hw, lane_tile),
            out_shape=jax.ShapeDtypeStruct((N, 1), jnp.float32),
            grid_spec=pltpu.PrefetchScalarGridSpec(
                num_scalar_prefetch=0,
                grid=(nb, nt),
                in_specs=[
                    pl.BlockSpec((bt, lane_tile), lambda b, t: (b, t)),
                    pl.BlockSpec((4, 8), lambda b, t: (0, 0)),
                ],
                out_specs=pl.BlockSpec((bt, 1), lambda b, t: (b, 0)),
                scratch_shapes=[pltpu.VMEM((bt, 1), jnp.float32)],
            ),
            compiler_params=pltpu.CompilerParams(
                dimension_semantics=("parallel", "arbitrary")),
            cost_estimate=pl.CostEstimate(flops=N * hw, transcendentals=N,
                                          bytes_accessed=N * hw * itemsize),
        )(x2, packed)

        out2 = pl.pallas_call(
            _scale_kernel,
            out_shape=jax.ShapeDtypeStruct((N, hw), x.dtype),
            grid_spec=pltpu.PrefetchScalarGridSpec(
                num_scalar_prefetch=0,
                grid=(nb, nt),
                in_specs=[
                    pl.BlockSpec((bt, lane_tile), lambda b, t: (b, t)),
                    pl.BlockSpec((bt, 1), lambda b, t: (b, 0)),
                ],
                out_specs=pl.BlockSpec((bt, lane_tile), lambda b, t: (b, t)),
            ),
            compiler_params=pltpu.CompilerParams(
                dimension_semantics=("parallel", "parallel")),
            cost_estimate=pl.CostEstimate(flops=N * hw, transcendentals=0,
                                          bytes_accessed=2 * N * hw * itemsize),
        )(x2, scale)

    return out2.reshape(N, C, H, W)


# ----------------- float64 numpy reference (literal 3x3 convs) -----------------
def _conv3x3_ref(x, w, b):
    N, C, H, W = x.shape
    xp = np.pad(x, ((0, 0), (0, 0), (1, 1), (1, 1)))
    out = np.zeros((N, w.shape[0], H, W), dtype=np.float64)
    for kh in range(3):
        for kw in range(3):
            out += np.einsum("nchw,oc->nohw", xp[:, :, kh:kh + H, kw:kw + W], w[:, :, kh, kw])
    return out + b[None, :, None, None]


def _calayer_reference(x, params):
    pooled = x.mean(axis=(2, 3), keepdims=True)
    h = np.maximum(_conv3x3_ref(pooled, params["w1"], params["b1"]), 0.0)
    z = _conv3x3_ref(h, params["w2"], params["b2"])
    s = 1.0 / (1.0 + np.exp(-z))
    return s * x


if __name__ == "__main__":
    key = jax.random.PRNGKey(0)
    kx, k1, k2, k3, k4 = jax.random.split(key, 5)
    # N not a multiple of 8 and HW not a multiple of 128 -> exercises partial-block handling.
    N, C, H, W = 5, 1, 24, 20
    x = jax.random.normal(kx, (N, C, H, W), jnp.float32)
    params = {
        "w1": (1.0 / 3.0) * jax.random.normal(k1, (8, 1, 3, 3), jnp.float32),
        "b1": 0.1 * jax.random.normal(k2, (8,), jnp.float32),
        "w2": (1.0 / np.sqrt(72.0)) * jax.random.normal(k3, (1, 8, 3, 3), jnp.float32),
        "b2": 0.1 * jax.random.normal(k4, (1,), jnp.float32),
    }

    ref = _calayer_reference(np.asarray(x, np.float64),
                             {k: np.asarray(v, np.float64) for k, v in params.items()})

    # Default (fused single-pass) path.
    out_fused = jax.block_until_ready(ca_layer_forward(x, params))
    d_fused = float(np.max(np.abs(np.asarray(out_fused, np.float64) - ref)))

    # Force the large-image two-pass tiled path on the same small input to validate it.
    out_tiled = jax.block_until_ready(ca_layer_forward(x, params, fused_max_block_bytes=0))
    d_tiled = float(np.max(np.abs(np.asarray(out_tiled, np.float64) - ref)))

    if d_fused > 1e-4 or d_tiled > 1e-4:
        raise AssertionError(f"Pallas CALayer mismatch vs reference: "
                             f"fused max|diff|={d_fused}, tiled max|diff|={d_tiled}")
    print("KERNEL_OK")
</pallas_src>

<mosaic_0001>
module attributes {stable_mosaic.version = 11 : i64} {
  func.func @kernel(%arg0: i32, %arg1: memref<8x480xf32, #tpu.memory_space<vmem>>, %arg2: memref<4x8xf32, #tpu.memory_space<vmem>>, %arg3: memref<8x480xf32, #tpu.memory_space<vmem>>) attributes {dimension_semantics = [#tpu.dimension_semantics<parallel>], iteration_bounds = array<i64: 1>, scalar_prefetch = 0 : i64, scratch_operands = 0 : i64, tpu.core_type = #tpu.core_type<tc>, window_params = [{transform_indices = @transform_0, window_bounds = array<i64: 8, 480>}, {pipeline_mode = #tpu.pipeline_mode<synchronous>, transform_indices = @transform_1, window_bounds = array<i64: 4, 8>}, {transform_indices = @transform_2, window_bounds = array<i64: 8, 480>}]} {
    %c0 = arith.constant 0 : index
    %c0_0 = arith.constant 0 : index
    %0 = vector.load %arg1[%c0, %c0_0] : memref<8x480xf32, #tpu.memory_space<vmem>>, vector<8x480xf32>
    %cst = arith.constant dense<0.000000e+00> : vector<8xf32>
    %1 = vector.multi_reduction <add>, %0, %cst [1] : vector<8x480xf32> to vector<8xf32>
    %2 = vector.shape_cast %1 : vector<8xf32> to vector<8x1xf32>
    %cst_1 = arith.constant 0.00208333344 : f32
    %3 = vector.broadcast %cst_1 : f32 to vector<8x1xf32>
    %4 = arith.mulf %2, %3 : vector<8x1xf32>
    %c0_2 = arith.constant 0 : index
    %c0_3 = arith.constant 0 : index
    %5 = vector.load %arg2[%c0_2, %c0_3] : memref<4x8xf32, #tpu.memory_space<vmem>>, vector<1x8xf32>
    %c1 = arith.constant 1 : index
    %c0_4 = arith.constant 0 : index
    %6 = vector.load %arg2[%c1, %c0_4] : memref<4x8xf32, #tpu.memory_space<vmem>>, vector<1x8xf32>
    %c2 = arith.constant 2 : index
    %c0_5 = arith.constant 0 : index
    %7 = vector.load %arg2[%c2, %c0_5] : memref<4x8xf32, #tpu.memory_space<vmem>>, vector<1x8xf32>
    %c3 = arith.constant 3 : index
    %c0_6 = arith.constant 0 : index
    %8 = vector.load %arg2[%c3, %c0_6] : memref<4x8xf32, #tpu.memory_space<vmem>>, vector<1x1xf32>
    %9 = vector.broadcast %4 : vector<8x1xf32> to vector<8x8xf32>
    %10 = vector.broadcast %5 : vector<1x8xf32> to vector<8x8xf32>
    %11 = arith.mulf %9, %10 : vector<8x8xf32>
    %12 = vector.broadcast %6 : vector<1x8xf32> to vector<8x8xf32>
    %13 = arith.addf %11, %12 : vector<8x8xf32>
    %cst_7 = arith.constant 0.000000e+00 : f32
    %14 = vector.broadcast %cst_7 : f32 to vector<8x8xf32>
    %15 = arith.maximumf %13, %14 : vector<8x8xf32>
    %16 = vector.broadcast %7 : vector<1x8xf32> to vector<8x8xf32>
    %17 = arith.mulf %15, %16 : vector<8x8xf32>
    %cst_8 = arith.constant dense<0.000000e+00> : vector<8xf32>
    %18 = vector.multi_reduction <add>, %17, %cst_8 [1] : vector<8x8xf32> to vector<8xf32>
    %19 = vector.shape_cast %18 : vector<8xf32> to vector<8x1xf32>
    %20 = vector.broadcast %8 : vector<1x1xf32> to vector<8x1xf32>
    %21 = arith.addf %19, %20 : vector<8x1xf32>
    %22 = arith.negf %21 : vector<8x1xf32>
    %23 = math.exp %22 : vector<8x1xf32>
    %cst_9 = arith.constant 1.000000e+00 : f32
    %24 = vector.broadcast %cst_9 : f32 to vector<8x1xf32>
    %25 = arith.addf %24, %23 : vector<8x1xf32>
    %26 = arith.divf %24, %25 : vector<8x1xf32>
    %27 = vector.broadcast %26 : vector<8x1xf32> to vector<8x480xf32>
    %28 = arith.mulf %0, %27 : vector<8x480xf32>
    %c0_10 = arith.constant 0 : index
    %c0_11 = arith.constant 0 : index
    %29 = vector.load %arg3[%c0_10, %c0_11] : memref<8x480xf32, #tpu.memory_space<vmem>>, vector<8x480xf32>
    tpu.vector_store %arg3[%c0_10, %c0_11], %28 {strides = array<i32>} : memref<8x480xf32, #tpu.memory_space<vmem>>, vector<8x480xf32>,
    return
  }
  func.func @transform_0(%arg0: i32) -> (i32, i32) {
    %c0_i32 = arith.constant 0 : i32
    %c0_i32_0 = arith.constant 0 : i32
    return %arg0, %c0_i32 : i32, i32
  }
  func.func @transform_1(%arg0: i32) -> (i32, i32) {
    %c0_i32 = arith.constant 0 : i32
    %c0_i32_0 = arith.constant 0 : i32
    %c0_i32_1 = arith.constant 0 : i32
    return %c0_i32, %c0_i32_0 : i32, i32
  }
  func.func @transform_2(%arg0: i32) -> (i32, i32) {
    %c0_i32 = arith.constant 0 : i32
    %c0_i32_0 = arith.constant 0 : i32
    return %arg0, %c0_i32 : i32, i32
  }
}

</mosaic_0001>

<llo_original>
// kernel: tpu_custom_call.1
$region0: #{tpu_custom_call.1}
  #allocation0 [shape = 'u32[]', space=smem, size = 0x4, offset = 0x4, fixed_abs, tag = 'smem constant byte address 0x4 - core index']
  #allocation1 [shape = 'u32[72,128]{1,0:T(1,128)}', space=vmem, size = 0x9000, scoped, tag = 'internal scratch']
  %s0 = inlined_call_operand.hbm [shape: f32[5,480], index: 0, kind: input, shape index: {}]
  %s1 = inlined_call_operand.hbm [shape: f32[4,8], index: 1, kind: input, shape index: {}]
  %s2 = inlined_call_operand.hbm [shape: f32[5,480], index: 2, kind: output, shape index: {}]
  %s3 = sld [smem:[#allocation0]]
  $region26: #{tpu_custom_call.1} parent=0
    _
  %s5 = ssub.s32 1, %s3
  %s6 = scalar_select 0, %s5, %s3
  $region1: #{tpu_custom_call.1} parent=0
    #allocation2 [shape = 'u8[16384]{0}', space=vmem, size = 0x4000, scoped, tag = 'input window, operand 0, single buffered']
    #allocation3 [shape = 's32[1]{0}', space=sflag, size = 0x4, scoped, tag = 'scoped memory for tpu_custom_call.1']
    #allocation4 [shape = 's32[1]{0}', space=sflag, size = 0x4, scoped, tag = 'scoped memory for tpu_custom_call.1']
    #allocation5 [shape = 'u8[2048]{0}', space=vmem, size = 0x800, scoped, tag = 'input window, operand 1, single buffered']
    #allocation6 [shape = 's32[1]{0}', space=sflag, size = 0x4, scoped, tag = 'scoped memory for tpu_custom_call.1']
    #allocation7 [shape = 'u8[16384]{0}', space=vmem, size = 0x4000, scoped, tag = 'output window, operand 0, single buffered']
    %7 = vsyncpa [#allocation3], 0
    %8 = vsyncpa [#allocation6], 0
    %9 = vsyncpa [#allocation4], 0
    // Predicated region
    $region2: #{tpu_custom_call.1} parent=1 // pred_check
      _
    $region3: #{tpu_custom_call.1} parent=1 // pred_check_branch
      %11 = sbr.rel (0) target = $region5
    $region4: #{tpu_custom_call.1} parent=1 // pred_region
      %13 = vsyncadd [#allocation3], 0
      %s15 = sshll.u32 %s0, 4
      %s16 = int_to_ptr.hbm [resolvable:$true] %s15
      %s17 = sshll.u32 [#allocation2], 4
      %s18 = int_to_ptr.vmem [resolvable:$true] %s17
      %20 = dma.hbm_to_vmem [thread:$0]  %s16, 512, %s18, [#allocation3]
    $region5: #{tpu_custom_call.1} parent=1 // pred_fallthru
      _
    // Predicated region
    $region6: #{tpu_custom_call.1} parent=1 // pred_check
      _
    $region7: #{tpu_custom_call.1} parent=1 // pred_check_branch
      %22 = sbr.rel (0) target = $region9
    $region8: #{tpu_custom_call.1} parent=1 // pred_region
      %24 = vsyncadd [#allocation6], 0
      %s26 = sshll.u32 %s1, 4
      %s27 = int_to_ptr.hbm [resolvable:$true] %s26
      %s28 = sshll.u32 [#allocation5], 4
      %s29 = int_to_ptr.vmem [resolvable:$true] %s28
      %31 = dma.hbm_to_vmem [thread:$0]  %s27, 64, %s29, [#allocation6]
    $region9: #{tpu_custom_call.1} parent=1 // pred_fallthru
      _
    // Predicated region
    $region10: #{tpu_custom_call.1} parent=1 // pred_check
      _
    $region11: #{tpu_custom_call.1} parent=1 // pred_check_branch
      %33 = sbr.rel (0) target = $region13
    $region12: #{tpu_custom_call.1} parent=1 // pred_region
      %35 = dma.done [#allocation3], 512
    $region13: #{tpu_custom_call.1} parent=1 // pred_fallthru
      _
    // Predicated region
    $region14: #{tpu_custom_call.1} parent=1 // pred_check
      _
    $region15: #{tpu_custom_call.1} parent=1 // pred_check_branch
      %37 = sbr.rel (0) target = $region17
    $region16: #{tpu_custom_call.1} parent=1 // pred_region
      %39 = dma.done [#allocation6], 64
    $region17: #{tpu_custom_call.1} parent=1 // pred_fallthru
      _
    %v40 = vld [vmem:[#allocation2] sm:$0xff]
    %v41 = vld [vmem:[#allocation2 + $0x8] sm:$0xff]
    %v42 = vld [vmem:[#allocation2 + $0x10] sm:$0xff]
    %v43 = vld [vmem:[#allocation2 + $0x18] sm:$0xff]
    %v44 = vadd.f32 %v40, %v41
    %v45 = vadd.f32 %v44, %v42
    %vm46 = vcmask 785408
    %v47 = vsel %vm46, %v43, 0.0
    %v48 = vadd.f32 %v45, %v47
    %49 = vadd.xlane.f32.xlu0 %v48
    %v50 = vpop.xlane.xlu0 %49
    %v51 = vmul.f32 %v50, 0.0020833334
    %v52 = vld [vmem:[#allocation5] sm:$0x1]
    %v53 = vld [vmem:[#allocation5 + $0x1] sm:$0x1]
    %v54 = vld [vmem:[#allocation5 + $0x2] sm:$0x1]
    %v55 = vld [vmem:[#allocation5 + $0x3] sm:$0x1]
    %v56 = vperm.slane %v52, 0
    %v57 = vmul.f32 %v51, %v56
    %v58 = vperm.slane %v53, 0
    %v59 = vadd.f32 %v57, %v58
    %v60 = vmax.f32 %v59, 0.0
    %v61 = vperm.slane %v54, 0
    %v62 = vmul.f32 %v60, %v61
    %vm63 = vcmask 64512
    %v64 = vsel %vm63, %v62, 0.0
    %65 = vadd.xlane.f32.xlu0 %v64
    %v66 = vpop.xlane.xlu0 %65
    %v67 = vperm.slane %v55, 0
    %v68 = vadd.f32 %v66, %v67
    %v69 = vxor.u32 %v68, 2147483648
    %v70 = vmul.f32 %v69, 1.442695
    %v71 = vpow.pop %v70
    %v72 = vadd.f32 %v71, 1.0
    %v73 = vrcp.pop %v72
    %v74 = vmul.f32 %v72, %v73
    %v75 = vsub.f32 1.0, %v74
    %v76 = vmul.f32 %v73, %v75
    %v77 = vadd.f32 %v73, %v76
    %vm78 = vweird.f32 %v72
    %vm79 = vweird.f32 %v73
    %vm80 = vmor %vm78, %vm79
    %v81 = vsel %vm80, %v73, %v77
    %v82 = vand.u32 2147483647, %v72
    %vm83 = vcmp.eq.f32.partialorder %v82, 8.507059e+37
    %v84 = vand.u32 %v72, 2147483648
    %v85 = vor.u32 1.1754944e-38, %v84
    %v86 = vsel %vm83, %v85, %v81
    %v87 = vmul.f32 1.0, %v86
    %89 = vset.pattern.permute.xlu0 0
    %90 = vperm.xlu0 %89, %v87
    %v91 = vpop.permute.xlu0 %90
    %v93 = vmul.f32 %v40, %v91
    %v94 = vmul.f32 %v41, %v91
    %v95 = vmul.f32 %v42, %v91
    %v96 = vmul.f32 %v43, %v91
    %97 = vst [vmem:[#allocation7] sm:$0xff] %v93
    %98 = vst [vmem:[#allocation7 + $0x8] sm:$0xff] %v94
    %99 = vst [vmem:[#allocation7 + $0x10] sm:$0xff] %v95
    %100 = vst.msk [vmem:[#allocation7 + $0x18] sm:$0xff] %vm46, %v96
    // Predicated region
    $region18: #{tpu_custom_call.1} parent=1 // pred_check
      _
    $region19: #{tpu_custom_call.1} parent=1 // pred_check_branch
      %102 = sbr.rel (0) target = $region21
    $region20: #{tpu_custom_call.1} parent=1 // pred_region
      %104 = vsyncadd [#allocation4], 0
      %s106 = sshll.u32 [#allocation7], 4
      %s107 = int_to_ptr.vmem [resolvable:$true] %s106
      %s108 = sshll.u32 %s2, 4
      %s109 = int_to_ptr.hbm [resolvable:$true] %s108
      %111 = dma.vmem_to_hbm [thread:$0]  %s107, 512, %s109, [#allocation4]
    $region21: #{tpu_custom_call.1} parent=1 // pred_fallthru
      _
    // Predicated region
    $region22: #{tpu_custom_call.1} parent=1 // pred_check
      _
    $region23: #{tpu_custom_call.1} parent=1 // pred_check_branch
      %113 = sbr.rel (0) target = $region25
    $region24: #{tpu_custom_call.1} parent=1 // pred_region
      %115 = dma.done [#allocation4], 512
    $region25: #{tpu_custom_call.1} parent=1 // pred_fallthru
      _
    %116 = vsyncpa [#allocation3], 1
    %117 = vsyncpa [#allocation6], 1
    %118 = vsyncpa [#allocation4], 1

</llo_original>
